<compile_context>
chip_gen: v6e
topology: v6e:2x2x1
jax: 0.10.0
libtpu: 0.0.40
codegen_flags: <defaults>
</compile_context>

<pallas_src>
import functools

import jax
import jax.numpy as jnp
from jax.experimental import pallas as pl
from jax.experimental.pallas import tpu as pltpu

IN_FEATURES = 1147
HIDDEN = 256
OUT_FEATURES = 15
OUT_PAD = 128          # lane-dense padded output width (sliced back to 15)
DEFAULT_TILE_B = 512   # batch tile: ~6 MiB working set, safe on v5e/v6e/v7x


def mlp_kernel(x_ref, w1_ref, b1_ref, w2_ref, b2_ref, o_ref):
    # fc1 + ReLU (MXU matmul over the raw K=1147 contraction, f32 accumulation)
    h = jnp.dot(x_ref[...], w1_ref[...], preferred_element_type=jnp.float32)
    h = jnp.maximum(h + b1_ref[...], 0.0)        # b1 is (1, HIDDEN), broadcasts
    # fc2 into the padded 128-wide output
    y = jnp.dot(h, w2_ref[...], preferred_element_type=jnp.float32)
    y = y + b2_ref[...]                          # b2 is (1, OUT_PAD)
    o_ref[...] = y.astype(o_ref.dtype)


def prepare_params(w1, b1, w2, b2):
    """One-time (init-time) parameter prep.

    w1 stays unpadded ([1147, 256], i.e. transposed vs PyTorch's [out, in]).
    fc2 weight/bias are zero-padded once to the lane-dense OUT_PAD=128 width.
    """
    b1_p = b1.reshape(1, HIDDEN)
    w2_p = jnp.zeros((HIDDEN, OUT_PAD), w2.dtype).at[:, :OUT_FEATURES].set(w2)
    b2_p = jnp.zeros((1, OUT_PAD), b2.dtype).at[0, :OUT_FEATURES].set(b2)
    return w1, b1_p, w2_p, b2_p


@functools.partial(jax.jit, static_argnames=("tile_b",))
def test_net_forward(x, w1, b1_p, w2_p, b2_p, *, tile_b=DEFAULT_TILE_B):
    """x: [B, 1147] f32.  Params as produced by prepare_params(). Returns [B, 15]."""
    B = x.shape[0]
    # Single tile equal to B for small batches (always a legal block shape);
    # otherwise 8-divisible tiles with Pallas masking any ragged tail.
    tb = B if B <= tile_b else tile_b
    grid = (pl.cdiv(B, tb),)

    cost = pl.CostEstimate(
        flops=2 * B * (IN_FEATURES * HIDDEN + HIDDEN * OUT_PAD),
        transcendentals=0,
        bytes_accessed=(
            B * (IN_FEATURES + OUT_PAD) * 4
            + (IN_FEATURES * HIDDEN + HIDDEN * OUT_PAD + HIDDEN + OUT_PAD) * 4
        ),
    )

    out_p = pl.pallas_call(
        mlp_kernel,
        out_shape=jax.ShapeDtypeStruct((B, OUT_PAD), jnp.float32),
        grid_spec=pltpu.PrefetchScalarGridSpec(
            num_scalar_prefetch=0,
            grid=grid,
            in_specs=[
                # x: batch-tiled, full (unpadded) feature extent on the lane axis
                pl.BlockSpec((tb, IN_FEATURES), lambda i: (i, 0)),
                # weights / biases: constant index_map -> VMEM-resident across steps
                pl.BlockSpec((IN_FEATURES, HIDDEN), lambda i: (0, 0)),
                pl.BlockSpec((1, HIDDEN), lambda i: (0, 0)),
                pl.BlockSpec((HIDDEN, OUT_PAD), lambda i: (0, 0)),
                pl.BlockSpec((1, OUT_PAD), lambda i: (0, 0)),
            ],
            out_specs=pl.BlockSpec((tb, OUT_PAD), lambda i: (i, 0)),
        ),
        compiler_params=pltpu.CompilerParams(
            dimension_semantics=("parallel",),
        ),
        cost_estimate=cost,
    )(x, w1, b1_p, w2_p, b2_p)

    return out_p[:, :OUT_FEATURES]


def init_params(key):
    """Deterministic init mimicking PyTorch nn.Linear default U(-1/sqrt(fan_in), +)."""
    k1, k2, k3, k4 = jax.random.split(key, 4)
    bound1 = 1.0 / (IN_FEATURES ** 0.5)
    bound2 = 1.0 / (HIDDEN ** 0.5)
    # stored as [in, out] (transpose of PyTorch's [out, in])
    w1 = jax.random.uniform(k1, (IN_FEATURES, HIDDEN), jnp.float32, -bound1, bound1)
    b1 = jax.random.uniform(k2, (HIDDEN,), jnp.float32, -bound1, bound1)
    w2 = jax.random.uniform(k3, (HIDDEN, OUT_FEATURES), jnp.float32, -bound2, bound2)
    b2 = jax.random.uniform(k4, (OUT_FEATURES,), jnp.float32, -bound2, bound2)
    return w1, b1, w2, b2


if __name__ == "__main__":
    key = jax.random.PRNGKey(0)
    kx, kp = jax.random.split(key)

    B = 8
    x = jax.random.normal(kx, (B, IN_FEATURES), jnp.float32)
    w1, b1, w2, b2 = init_params(kp)

    # One-time parameter prep (hoisted out of the per-call path).
    w1_k, b1_p, w2_p, b2_p = prepare_params(w1, b1, w2, b2)

    out = test_net_forward(x, w1_k, b1_p, w2_p, b2_p)
    out = jax.block_until_ready(out)

    # reference check in plain JAX
    ref = jnp.maximum(x @ w1 + b1, 0.0) @ w2 + b2
    assert out.shape == (B, OUT_FEATURES)
    assert jnp.allclose(out, ref, atol=1e-4, rtol=1e-4), "mismatch vs reference"

    # also exercise the multi-tile (batch-tiled) path with a ragged tail
    B2 = 1040  # > DEFAULT_TILE_B, not a multiple of 512
    x2 = jax.random.normal(jax.random.PRNGKey(1), (B2, IN_FEATURES), jnp.float32)
    out2 = jax.block_until_ready(test_net_forward(x2, w1_k, b1_p, w2_p, b2_p))
    ref2 = jnp.maximum(x2 @ w1 + b1, 0.0) @ w2 + b2
    assert out2.shape == (B2, OUT_FEATURES)
    assert jnp.allclose(out2, ref2, atol=1e-4, rtol=1e-4), "mismatch vs reference (tiled)"

    print("KERNEL_OK")
</pallas_src>

<mosaic_0001>
module attributes {stable_mosaic.version = 11 : i64} {
  func.func @mlp_kernel(%arg0: i32, %arg1: memref<8x1147xf32, #tpu.memory_space<vmem>>, %arg2: memref<1147x256xf32, #tpu.memory_space<vmem>>, %arg3: memref<1x256xf32, #tpu.memory_space<vmem>>, %arg4: memref<256x128xf32, #tpu.memory_space<vmem>>, %arg5: memref<1x128xf32, #tpu.memory_space<vmem>>, %arg6: memref<8x128xf32, #tpu.memory_space<vmem>>) attributes {dimension_semantics = [#tpu.dimension_semantics<parallel>], iteration_bounds = array<i64: 1>, scalar_prefetch = 0 : i64, scratch_operands = 0 : i64, tpu.core_type = #tpu.core_type<tc>, window_params = [{transform_indices = @transform_0, window_bounds = array<i64: 8, 1147>}, {pipeline_mode = #tpu.pipeline_mode<synchronous>, transform_indices = @transform_1, window_bounds = array<i64: 1147, 256>}, {pipeline_mode = #tpu.pipeline_mode<synchronous>, transform_indices = @transform_2, window_bounds = array<i64: 1, 256>}, {pipeline_mode = #tpu.pipeline_mode<synchronous>, transform_indices = @transform_3, window_bounds = array<i64: 256, 128>}, {pipeline_mode = #tpu.pipeline_mode<synchronous>, transform_indices = @transform_4, window_bounds = array<i64: 1, 128>}, {transform_indices = @transform_5, window_bounds = array<i64: 8, 128>}]} {
    %c0 = arith.constant 0 : index
    %c0_0 = arith.constant 0 : index
    %0 = vector.load %arg1[%c0, %c0_0] : memref<8x1147xf32, #tpu.memory_space<vmem>>, vector<8x1147xf32>
    %c0_1 = arith.constant 0 : index
    %c0_2 = arith.constant 0 : index
    %1 = vector.load %arg2[%c0_1, %c0_2] : memref<1147x256xf32, #tpu.memory_space<vmem>>, vector<1147x256xf32>
    %cst = arith.constant dense<0.000000e+00> : vector<8x256xf32>
    %2 = tpu.matmul %0, %1, %cst {dimension_numbers = #tpu.dot_dimension_numbers<[1], [0], [0], [1], [0, 0, 1, 1], [], []>} : vector<8x1147xf32>, vector<1147x256xf32>, vector<8x256xf32> -> vector<8x256xf32>
    %c0_3 = arith.constant 0 : index
    %c0_4 = arith.constant 0 : index
    %3 = vector.load %arg3[%c0_3, %c0_4] : memref<1x256xf32, #tpu.memory_space<vmem>>, vector<1x256xf32>
    %4 = vector.broadcast %3 : vector<1x256xf32> to vector<8x256xf32>
    %5 = arith.addf %2, %4 : vector<8x256xf32>
    %cst_5 = arith.constant 0.000000e+00 : f32
    %6 = vector.broadcast %cst_5 : f32 to vector<8x256xf32>
    %7 = arith.maximumf %5, %6 : vector<8x256xf32>
    %c0_6 = arith.constant 0 : index
    %c0_7 = arith.constant 0 : index
    %8 = vector.load %arg4[%c0_6, %c0_7] : memref<256x128xf32, #tpu.memory_space<vmem>>, vector<256x128xf32>
    %cst_8 = arith.constant dense<0.000000e+00> : vector<8x128xf32>
    %9 = tpu.matmul %7, %8, %cst_8 {dimension_numbers = #tpu.dot_dimension_numbers<[1], [0], [0], [1], [0, 0, 1, 1], [], []>} : vector<8x256xf32>, vector<256x128xf32>, vector<8x128xf32> -> vector<8x128xf32>
    %c0_9 = arith.constant 0 : index
    %c0_10 = arith.constant 0 : index
    %10 = vector.load %arg5[%c0_9, %c0_10] : memref<1x128xf32, #tpu.memory_space<vmem>>, vector<1x128xf32>
    %11 = vector.broadcast %10 : vector<1x128xf32> to vector<8x128xf32>
    %12 = arith.addf %9, %11 : vector<8x128xf32>
    %c0_11 = arith.constant 0 : index
    %c0_12 = arith.constant 0 : index
    %13 = vector.load %arg6[%c0_11, %c0_12] : memref<8x128xf32, #tpu.memory_space<vmem>>, vector<8x128xf32>
    tpu.vector_store %arg6[%c0_11, %c0_12], %12 {strides = array<i32>} : memref<8x128xf32, #tpu.memory_space<vmem>>, vector<8x128xf32>,
    return
  }
  func.func @transform_0(%arg0: i32) -> (i32, i32) {
    %c0_i32 = arith.constant 0 : i32
    %c0_i32_0 = arith.constant 0 : i32
    return %arg0, %c0_i32 : i32, i32
  }
  func.func @transform_1(%arg0: i32) -> (i32, i32) {
    %c0_i32 = arith.constant 0 : i32
    %c0_i32_0 = arith.constant 0 : i32
    %c0_i32_1 = arith.constant 0 : i32
    return %c0_i32, %c0_i32_0 : i32, i32
  }
  func.func @transform_2(%arg0: i32) -> (i32, i32) {
    %c0_i32 = arith.constant 0 : i32
    %c0_i32_0 = arith.constant 0 : i32
    %c0_i32_1 = arith.constant 0 : i32
    return %c0_i32, %c0_i32_0 : i32, i32
  }
  func.func @transform_3(%arg0: i32) -> (i32, i32) {
    %c0_i32 = arith.constant 0 : i32
    %c0_i32_0 = arith.constant 0 : i32
    %c0_i32_1 = arith.constant 0 : i32
    return %c0_i32, %c0_i32_0 : i32, i32
  }
  func.func @transform_4(%arg0: i32) -> (i32, i32) {
    %c0_i32 = arith.constant 0 : i32
    %c0_i32_0 = arith.constant 0 : i32
    %c0_i32_1 = arith.constant 0 : i32
    return %c0_i32, %c0_i32_0 : i32, i32
  }
  func.func @transform_5(%arg0: i32) -> (i32, i32) {
    %c0_i32 = arith.constant 0 : i32
    %c0_i32_0 = arith.constant 0 : i32
    return %arg0, %c0_i32 : i32, i32
  }
}

</mosaic_0001>

<llo_original>
// kernel: test_net_forward.1
$region0: #{test_net_forward.1}
  #allocation0 [shape = 'u32[]', space=smem, size = 0x4, offset = 0x4, fixed_abs, tag = 'smem constant byte address 0x4 - core index']
  #allocation1 [shape = 'u32[144,128]{1,0:T(1,128)}', space=vmem, size = 0x12000, scoped, tag = 'internal scratch']
  %s0 = inlined_call_operand.hbm [shape: f32[8,1147], index: 0, kind: input, shape index: {}]
  %s1 = inlined_call_operand.hbm [shape: f32[1147,256], index: 1, kind: input, shape index: {}]
  %s2 = inlined_call_operand.hbm [shape: f32[1,256], index: 2, kind: input, shape index: {}]
  %s3 = inlined_call_operand.hbm [shape: f32[256,128], index: 3, kind: input, shape index: {}]
  %s4 = inlined_call_operand.hbm [shape: f32[1,128], index: 4, kind: input, shape index: {}]
  %s5 = inlined_call_operand.hbm [shape: f32[8,128], index: 5, kind: output, shape index: {}]
  %s6 = sld [smem:[#allocation0]]
  $region50: #{test_net_forward.1} parent=0
    _
  %s8 = ssub.s32 1, %s6
  %s9 = scalar_select 0, %s8, %s6
  $region1: #{test_net_forward.1} parent=0
    #allocation2 [shape = 'u8[36864]{0}', space=vmem, size = 0x9000, scoped, tag = 'input window, operand 0, single buffered']
    #allocation3 [shape = 's32[1]{0}', space=sflag, size = 0x4, scoped, tag = 'scoped memory for test_net_forward.1']
    #allocation4 [shape = 's32[1]{0}', space=sflag, size = 0x4, scoped, tag = 'scoped memory for test_net_forward.1']
    #allocation5 [shape = 'u8[1179648]{0}', space=vmem, size = 0x120000, scoped, tag = 'input window, operand 1, single buffered']
    #allocation6 [shape = 's32[1]{0}', space=sflag, size = 0x4, scoped, tag = 'scoped memory for test_net_forward.1']
    #allocation7 [shape = 'u8[1024]{0}', space=vmem, size = 0x400, scoped, tag = 'input window, operand 2, single buffered']
    #allocation8 [shape = 'u8[131072]{0}', space=vmem, size = 0x20000, scoped, tag = 'input window, operand 3, single buffered']
    #allocation9 [shape = 's32[1]{0}', space=sflag, size = 0x4, scoped, tag = 'scoped memory for test_net_forward.1']
    #allocation10 [shape = 'u8[512]{0}', space=vmem, size = 0x400, scoped, tag = 'input window, operand 4, single buffered']
    #allocation11 [shape = 'u8[4096]{0}', space=vmem, size = 0x1000, scoped, tag = 'output window, operand 0, single buffered']
    %10 = vsyncpa [#allocation3], 0
    %11 = vsyncpa [#allocation6], 0
    %12 = vsyncpa [#allocation9], 0
    %13 = vsyncpa [#allocation4], 0
    // Predicated region
    $region2: #{test_net_forward.1} parent=1 // pred_check
      _
    $region3: #{test_net_forward.1} parent=1 // pred_check_branch
      %15 = sbr.rel (0) target = $region5
    $region4: #{test_net_forward.1} parent=1 // pred_region
      %s17 = ssub.s32 1152, 1152
      %18 = vsyncadd [#allocation3], %s17
      %s20 = sshll.u32 [#allocation2], 4
      %s21 = int_to_ptr.vmem [resolvable:$true] %s20
      %23 = dma.hbm_to_vmem [thread:$0]  %s0, 1152, %s21, [#allocation3]
    $region5: #{test_net_forward.1} parent=1 // pred_fallthru
      _
    // Predicated region
    $region6: #{test_net_forward.1} parent=1 // pred_check
      _
    $region7: #{test_net_forward.1} parent=1 // pred_check_branch
      %25 = sbr.rel (0) target = $region9
    $region8: #{test_net_forward.1} parent=1 // pred_region
      %s27 = ssub.s32 36864, 36864
      %28 = vsyncadd [#allocation6], %s27
      %s29 = sshll.u32 [#allocation5], 4
      %s30 = int_to_ptr.vmem [resolvable:$true] %s29
      %35 = dma.hbm_to_vmem [thread:$0]  %s1, 36864, %s30, [#allocation6], 256, 256, 16
    $region9: #{test_net_forward.1} parent=1 // pred_fallthru
      _
    // Predicated region
    $region10: #{test_net_forward.1} parent=1 // pred_check
      _
    $region11: #{test_net_forward.1} parent=1 // pred_check_branch
      %37 = sbr.rel (0) target = $region13
    $region12: #{test_net_forward.1} parent=1 // pred_region
      %s39 = ssub.s32 32, 32
      %40 = vsyncadd [#allocation6], %s39
      %s42 = sshll.u32 [#allocation7], 4
      %s43 = int_to_ptr.vmem [resolvable:$true] %s42
      %45 = dma.hbm_to_vmem [thread:$0]  %s2, 32, %s43, [#allocation6]
    $region13: #{test_net_forward.1} parent=1 // pred_fallthru
      _
    // Predicated region
    $region14: #{test_net_forward.1} parent=1 // pred_check
      _
    $region15: #{test_net_forward.1} parent=1 // pred_check_branch
      %47 = sbr.rel (0) target = $region17
    $region16: #{test_net_forward.1} parent=1 // pred_region
      %s49 = ssub.s32 4096, 4096
      %50 = vsyncadd [#allocation9], %s49
      %s51 = sshll.u32 [#allocation8], 4
      %s52 = int_to_ptr.vmem [resolvable:$true] %s51
      %57 = dma.hbm_to_vmem [thread:$0]  %s3, 4096, %s52, [#allocation9], 128, 128, 8
    $region17: #{test_net_forward.1} parent=1 // pred_fallthru
      _
    // Predicated region
    $region18: #{test_net_forward.1} parent=1 // pred_check
      _
    $region19: #{test_net_forward.1} parent=1 // pred_check_branch
      %59 = sbr.rel (0) target = $region21
    $region20: #{test_net_forward.1} parent=1 // pred_region
      %s61 = ssub.s32 16, 16
      %62 = vsyncadd [#allocation9], %s61
      %s64 = sshll.u32 [#allocation10], 4
      %s65 = int_to_ptr.vmem [resolvable:$true] %s64
      %67 = dma.hbm_to_vmem [thread:$0]  %s4, 16, %s65, [#allocation9]
    $region21: #{test_net_forward.1} parent=1 // pred_fallthru
      _
    // Predicated region
    $region22: #{test_net_forward.1} parent=1 // pred_check
      _
    $region23: #{test_net_forward.1} parent=1 // pred_check_branch
      %69 = sbr.rel (0) target = $region25
    $region24: #{test_net_forward.1} parent=1 // pred_region
      %70 = dma.done [#allocation3], 1152
    $region25: #{test_net_forward.1} parent=1 // pred_fallthru
      _
    // Predicated region
    $region26: #{test_net_forward.1} parent=1 // pred_check
      _
    $region27: #{test_net_forward.1} parent=1 // pred_check_branch
      %72 = sbr.rel (0) target = $region29
    $region28: #{test_net_forward.1} parent=1 // pred_region
      %73 = dma.done [#allocation6], 36864
    $region29: #{test_net_forward.1} parent=1 // pred_fallthru
      _
    // Predicated region
    $region30: #{test_net_forward.1} parent=1 // pred_check
      _
    $region31: #{test_net_forward.1} parent=1 // pred_check_branch
      %75 = sbr.rel (0) target = $region33
    $region32: #{test_net_forward.1} parent=1 // pred_region
      %76 = dma.done [#allocation6], 32
    $region33: #{test_net_forward.1} parent=1 // pred_fallthru
      _
    // Predicated region
    $region34: #{test_net_forward.1} parent=1 // pred_check
      _
    $region35: #{test_net_forward.1} parent=1 // pred_check_branch
      %78 = sbr.rel (0) target = $region37
    $region36: #{test_net_forward.1} parent=1 // pred_region
      %79 = dma.done [#allocation9], 4096
    $region37: #{test_net_forward.1} parent=1 // pred_fallthru
      _
    // Predicated region
    $region38: #{test_net_forward.1} parent=1 // pred_check
      _
    $region39: #{test_net_forward.1} parent=1 // pred_check_branch
      %81 = sbr.rel (0) target = $region41
    $region40: #{test_net_forward.1} parent=1 // pred_region
      %82 = dma.done [#allocation9], 16
    $region41: #{test_net_forward.1} parent=1 // pred_fallthru
      _
    %v83 = vld [vmem:[#allocation2] sm:$0xff]
    %v84 = vld [vmem:[#allocation2 + $0x8] sm:$0xff]
    %v85 = vld [vmem:[#allocation2 + $0x10] sm:$0xff]
    %v86 = vld [vmem:[#allocation2 + $0x18] sm:$0xff]
    %v87 = vld [vmem:[#allocation2 + $0x20] sm:$0xff]
    %v88 = vld [vmem:[#allocation2 + $0x28] sm:$0xff]
    %v89 = vld [vmem:[#allocation2 + $0x30] sm:$0xff]
    %v90 = vld [vmem:[#allocation2 + $0x38] sm:$0xff]
    %v91 = vld [vmem:[#allocation2 + $0x40] sm:$0xff]
    %v92 = vld [vmem:[#allocation5] sm:$0xff]
    %v93 = vld [vmem:[#allocation5 + $0x8] sm:$0xff]
    %v94 = vld [vmem:[#allocation5 + $0x10] sm:$0xff]
    %v95 = vld [vmem:[#allocation5 + $0x18] sm:$0xff]
    %v96 = vld [vmem:[#allocation5 + $0x20] sm:$0xff]
    %v97 = vld [vmem:[#allocation5 + $0x28] sm:$0xff]
    %v98 = vld [vmem:[#allocation5 + $0x30] sm:$0xff]
    %v99 = vld [vmem:[#allocation5 + $0x38] sm:$0xff]
    %v100 = vld [vmem:[#allocation5 + $0x40] sm:$0xff]
    %v101 = vld [vmem:[#allocation5 + $0x48] sm:$0xff]
    %v102 = vld [vmem:[#allocation5 + $0x50] sm:$0xff]
    %v103 = vld [vmem:[#allocation5 + $0x58] sm:$0xff]
    %v104 = vld [vmem:[#allocation5 + $0x60] sm:$0xff]
    %v105 = vld [vmem:[#allocation5 + $0x68] sm:$0xff]
    %v106 = vld [vmem:[#allocation5 + $0x70] sm:$0xff]
    %v107 = vld [vmem:[#allocation5 + $0x78] sm:$0xff]
    %v108 = vld [vmem:[#allocation5 + $0x80] sm:$0xff]
    %v109 = vld [vmem:[#allocation5 + $0x88] sm:$0xff]
    %v110 = vld [vmem:[#allocation5 + $0x90] sm:$0xff]
    %v111 = vld [vmem:[#allocation5 + $0x98] sm:$0xff]
    %v112 = vld [vmem:[#allocation5 + $0xa0] sm:$0xff]
    %v113 = vld [vmem:[#allocation5 + $0xa8] sm:$0xff]
    %v114 = vld [vmem:[#allocation5 + $0xb0] sm:$0xff]
    %v115 = vld [vmem:[#allocation5 + $0xb8] sm:$0xff]
    %v116 = vld [vmem:[#allocation5 + $0xc0] sm:$0xff]
    %v117 = vld [vmem:[#allocation5 + $0xc8] sm:$0xff]
    %v118 = vld [vmem:[#allocation5 + $0xd0] sm:$0xff]
    %v119 = vld [vmem:[#allocation5 + $0xd8] sm:$0xff]
    %v120 = vld [vmem:[#allocation5 + $0xe0] sm:$0xff]
    %v121 = vld [vmem:[#allocation5 + $0xe8] sm:$0xff]
    %v122 = vld [vmem:[#allocation5 + $0xf0] sm:$0xff]
    %v123 = vld [vmem:[#allocation5 + $0xf8] sm:$0xff]
    %v124 = vld [vmem:[#allocation5 + $0x100] sm:$0xff]
    %v125 = vld [vmem:[#allocation5 + $0x108] sm:$0xff]
    %v126 = vld [vmem:[#allocation5 + $0x110] sm:$0xff]
    %v127 = vld [vmem:[#allocation5 + $0x118] sm:$0xff]
    %v128 = vld [vmem:[#allocation5 + $0x120] sm:$0xff]
    %v129 = vld [vmem:[#allocation5 + $0x128] sm:$0xff]
    %v130 = vld [vmem:[#allocation5 + $0x130] sm:$0xff]
    %v131 = vld [vmem:[#allocation5 + $0x138] sm:$0xff]
    %v132 = vld [vmem:[#allocation5 + $0x140] sm:$0xff]
    %v133 = vld [vmem:[#allocation5 + $0x148] sm:$0xff]
    %v134 = vld [vmem:[#allocation5 + $0x150] sm:$0xff]
    %v135 = vld [vmem:[#allocation5 + $0x158] sm:$0xff]
    %v136 = vld [vmem:[#allocation5 + $0x160] sm:$0xff]
    %v137 = vld [vmem:[#allocation5 + $0x168] sm:$0xff]
    %v138 = vld [vmem:[#allocation5 + $0x170] sm:$0xff]
    %v139 = vld [vmem:[#allocation5 + $0x178] sm:$0xff]
    %v140 = vld [vmem:[#allocation5 + $0x180] sm:$0xff]
    %v141 = vld [vmem:[#allocation5 + $0x188] sm:$0xff]
    %v142 = vld [vmem:[#allocation5 + $0x190] sm:$0xff]
    %v143 = vld [vmem:[#allocation5 + $0x198] sm:$0xff]
    %v144 = vld [vmem:[#allocation5 + $0x1a0] sm:$0xff]
    %v145 = vld [vmem:[#allocation5 + $0x1a8] sm:$0xff]
    %v146 = vld [vmem:[#allocation5 + $0x1b0] sm:$0xff]
    %v147 = vld [vmem:[#allocation5 + $0x1b8] sm:$0xff]
    %v148 = vld [vmem:[#allocation5 + $0x1c0] sm:$0xff]
    %v149 = vld [vmem:[#allocation5 + $0x1c8] sm:$0xff]
    %v150 = vld [vmem:[#allocation5 + $0x1d0] sm:$0xff]
    %v151 = vld [vmem:[#allocation5 + $0x1d8] sm:$0xff]
    %v152 = vld [vmem:[#allocation5 + $0x1e0] sm:$0xff]
    %v153 = vld [vmem:[#allocation5 + $0x1e8] sm:$0xff]
    %v154 = vld [vmem:[#allocation5 + $0x1f0] sm:$0xff]
    %v155 = vld [vmem:[#allocation5 + $0x1f8] sm:$0xff]
    %v156 = vld [vmem:[#allocation5 + $0x200] sm:$0xff]
    %v157 = vld [vmem:[#allocation5 + $0x208] sm:$0xff]
    %v158 = vld [vmem:[#allocation5 + $0x210] sm:$0xff]
    %v159 = vld [vmem:[#allocation5 + $0x218] sm:$0xff]
    %v160 = vld [vmem:[#allocation5 + $0x220] sm:$0xff]
    %v161 = vld [vmem:[#allocation5 + $0x228] sm:$0xff]
    %v162 = vld [vmem:[#allocation5 + $0x230] sm:$0xff]
    %v163 = vld [vmem:[#allocation5 + $0x238] sm:$0xff]
    %v164 = vld [vmem:[#allocation5 + $0x240] sm:$0xff]
    %v165 = vld [vmem:[#allocation5 + $0x248] sm:$0xff]
    %v166 = vld [vmem:[#allocation5 + $0x250] sm:$0xff]
    %v167 = vld [vmem:[#allocation5 + $0x258] sm:$0xff]
    %v168 = vld [vmem:[#allocation5 + $0x260] sm:$0xff]
    %v169 = vld [vmem:[#allocation5 + $0x268] sm:$0xff]
    %v170 = vld [vmem:[#allocation5 + $0x270] sm:$0xff]
    %v171 = vld [vmem:[#allocation5 + $0x278] sm:$0xff]
    %v172 = vld [vmem:[#allocation5 + $0x280] sm:$0xff]
    %v173 = vld [vmem:[#allocation5 + $0x288] sm:$0xff]
    %v174 = vld [vmem:[#allocation5 + $0x290] sm:$0xff]
    %v175 = vld [vmem:[#allocation5 + $0x298] sm:$0xff]
    %v176 = vld [vmem:[#allocation5 + $0x2a0] sm:$0xff]
    %v177 = vld [vmem:[#allocation5 + $0x2a8] sm:$0xff]
    %v178 = vld [vmem:[#allocation5 + $0x2b0] sm:$0xff]
    %v179 = vld [vmem:[#allocation5 + $0x2b8] sm:$0xff]
    %v180 = vld [vmem:[#allocation5 + $0x2c0] sm:$0xff]
    %v181 = vld [vmem:[#allocation5 + $0x2c8] sm:$0xff]
    %v182 = vld [vmem:[#allocation5 + $0x2d0] sm:$0xff]
    %v183 = vld [vmem:[#allocation5 + $0x2d8] sm:$0xff]
    %v184 = vld [vmem:[#allocation5 + $0x2e0] sm:$0xff]
    %v185 = vld [vmem:[#allocation5 + $0x2e8] sm:$0xff]
    %v186 = vld [vmem:[#allocation5 + $0x2f0] sm:$0xff]
    %v187 = vld [vmem:[#allocation5 + $0x2f8] sm:$0xff]
    %v188 = vld [vmem:[#allocation5 + $0x300] sm:$0xff]
    %v189 = vld [vmem:[#allocation5 + $0x308] sm:$0xff]
    %v190 = vld [vmem:[#allocation5 + $0x310] sm:$0xff]
    %v191 = vld [vmem:[#allocation5 + $0x318] sm:$0xff]
    %v192 = vld [vmem:[#allocation5 + $0x320] sm:$0xff]
    %v193 = vld [vmem:[#allocation5 + $0x328] sm:$0xff]
    %v194 = vld [vmem:[#allocation5 + $0x330] sm:$0xff]
    %v195 = vld [vmem:[#allocation5 + $0x338] sm:$0xff]
    %v196 = vld [vmem:[#allocation5 + $0x340] sm:$0xff]
    %v197 = vld [vmem:[#allocation5 + $0x348] sm:$0xff]
    %v198 = vld [vmem:[#allocation5 + $0x350] sm:$0xff]
    %v199 = vld [vmem:[#allocation5 + $0x358] sm:$0xff]
    %v200 = vld [vmem:[#allocation5 + $0x360] sm:$0xff]
    %v201 = vld [vmem:[#allocation5 + $0x368] sm:$0xff]
    %v202 = vld [vmem:[#allocation5 + $0x370] sm:$0xff]
    %v203 = vld [vmem:[#allocation5 + $0x378] sm:$0xff]
    %v204 = vld [vmem:[#allocation5 + $0x380] sm:$0xff]
    %v205 = vld [vmem:[#allocation5 + $0x388] sm:$0xff]
    %v206 = vld [vmem:[#allocation5 + $0x390] sm:$0xff]
    %v207 = vld [vmem:[#allocation5 + $0x398] sm:$0xff]
    %v208 = vld [vmem:[#allocation5 + $0x3a0] sm:$0xff]
    %v209 = vld [vmem:[#allocation5 + $0x3a8] sm:$0xff]
    %v210 = vld [vmem:[#allocation5 + $0x3b0] sm:$0xff]
    %v211 = vld [vmem:[#allocation5 + $0x3b8] sm:$0xff]
    %v212 = vld [vmem:[#allocation5 + $0x3c0] sm:$0xff]
    %v213 = vld [vmem:[#allocation5 + $0x3c8] sm:$0xff]
    %v214 = vld [vmem:[#allocation5 + $0x3d0] sm:$0xff]
    %v215 = vld [vmem:[#allocation5 + $0x3d8] sm:$0xff]
    %v216 = vld [vmem:[#allocation5 + $0x3e0] sm:$0xff]
    %v217 = vld [vmem:[#allocation5 + $0x3e8] sm:$0xff]
    %v218 = vld [vmem:[#allocation5 + $0x3f0] sm:$0xff]
    %v219 = vld [vmem:[#allocation5 + $0x3f8] sm:$0xff]
    %v220 = vld [vmem:[#allocation5 + $0x400] sm:$0xff]
    %v221 = vld [vmem:[#allocation5 + $0x408] sm:$0xff]
    %v222 = vld [vmem:[#allocation5 + $0x410] sm:$0xff]
    %v223 = vld [vmem:[#allocation5 + $0x418] sm:$0xff]
    %v224 = vld [vmem:[#allocation5 + $0x420] sm:$0xff]
    %v225 = vld [vmem:[#allocation5 + $0x428] sm:$0xff]
    %v226 = vld [vmem:[#allocation5 + $0x430] sm:$0xff]
    %v227 = vld [vmem:[#allocation5 + $0x438] sm:$0xff]
    %v228 = vld [vmem:[#allocation5 + $0x440] sm:$0xff]
    %v229 = vld [vmem:[#allocation5 + $0x448] sm:$0xff]
    %v230 = vld [vmem:[#allocation5 + $0x450] sm:$0xff]
    %v231 = vld [vmem:[#allocation5 + $0x458] sm:$0xff]
    %v232 = vld [vmem:[#allocation5 + $0x460] sm:$0xff]
    %v233 = vld [vmem:[#allocation5 + $0x468] sm:$0xff]
    %v234 = vld [vmem:[#allocation5 + $0x470] sm:$0xff]
    %v235 = vld [vmem:[#allocation5 + $0x478] sm:$0xff]
    %v236 = vld [vmem:[#allocation5 + $0x480] sm:$0xff]
    %v237 = vld [vmem:[#allocation5 + $0x488] sm:$0xff]
    %v238 = vld [vmem:[#allocation5 + $0x490] sm:$0xff]
    %v239 = vld [vmem:[#allocation5 + $0x498] sm:$0xff]
    %v240 = vld [vmem:[#allocation5 + $0x4a0] sm:$0xff]
    %v241 = vld [vmem:[#allocation5 + $0x4a8] sm:$0xff]
    %v242 = vld [vmem:[#allocation5 + $0x4b0] sm:$0xff]
    %v243 = vld [vmem:[#allocation5 + $0x4b8] sm:$0xff]
    %v244 = vld [vmem:[#allocation5 + $0x4c0] sm:$0xff]
    %v245 = vld [vmem:[#allocation5 + $0x4c8] sm:$0xff]
    %v246 = vld [vmem:[#allocation5 + $0x4d0] sm:$0xff]
    %v247 = vld [vmem:[#allocation5 + $0x4d8] sm:$0xff]
    %v248 = vld [vmem:[#allocation5 + $0x4e0] sm:$0xff]
    %v249 = vld [vmem:[#allocation5 + $0x4e8] sm:$0xff]
    %v250 = vld [vmem:[#allocation5 + $0x4f0] sm:$0xff]
    %v251 = vld [vmem:[#allocation5 + $0x4f8] sm:$0xff]
    %v252 = vld [vmem:[#allocation5 + $0x500] sm:$0xff]
    %v253 = vld [vmem:[#allocation5 + $0x508] sm:$0xff]
    %v254 = vld [vmem:[#allocation5 + $0x510] sm:$0xff]
    %v255 = vld [vmem:[#allocation5 + $0x518] sm:$0xff]
    %v256 = vld [vmem:[#allocation5 + $0x520] sm:$0xff]
    %v257 = vld [vmem:[#allocation5 + $0x528] sm:$0xff]
    %v258 = vld [vmem:[#allocation5 + $0x530] sm:$0xff]
    %v259 = vld [vmem:[#allocation5 + $0x538] sm:$0xff]
    %v260 = vld [vmem:[#allocation5 + $0x540] sm:$0xff]
    %v261 = vld [vmem:[#allocation5 + $0x548] sm:$0xff]
    %v262 = vld [vmem:[#allocation5 + $0x550] sm:$0xff]
    %v263 = vld [vmem:[#allocation5 + $0x558] sm:$0xff]
    %v264 = vld [vmem:[#allocation5 + $0x560] sm:$0xff]
    %v265 = vld [vmem:[#allocation5 + $0x568] sm:$0xff]
    %v266 = vld [vmem:[#allocation5 + $0x570] sm:$0xff]
    %v267 = vld [vmem:[#allocation5 + $0x578] sm:$0xff]
    %v268 = vld [vmem:[#allocation5 + $0x580] sm:$0xff]
    %v269 = vld [vmem:[#allocation5 + $0x588] sm:$0xff]
    %v270 = vld [vmem:[#allocation5 + $0x590] sm:$0xff]
    %v271 = vld [vmem:[#allocation5 + $0x598] sm:$0xff]
    %v272 = vld [vmem:[#allocation5 + $0x5a0] sm:$0xff]
    %v273 = vld [vmem:[#allocation5 + $0x5a8] sm:$0xff]
    %v274 = vld [vmem:[#allocation5 + $0x5b0] sm:$0xff]
    %v275 = vld [vmem:[#allocation5 + $0x5b8] sm:$0xff]
    %v276 = vld [vmem:[#allocation5 + $0x5c0] sm:$0xff]
    %v277 = vld [vmem:[#allocation5 + $0x5c8] sm:$0xff]
    %v278 = vld [vmem:[#allocation5 + $0x5d0] sm:$0xff]
    %v279 = vld [vmem:[#allocation5 + $0x5d8] sm:$0xff]
    %v280 = vld [vmem:[#allocation5 + $0x5e0] sm:$0xff]
    %v281 = vld [vmem:[#allocation5 + $0x5e8] sm:$0xff]
    %v282 = vld [vmem:[#allocation5 + $0x5f0] sm:$0xff]
    %v283 = vld [vmem:[#allocation5 + $0x5f8] sm:$0xff]
    %v284 = vld [vmem:[#allocation5 + $0x600] sm:$0xff]
    %v285 = vld [vmem:[#allocation5 + $0x608] sm:$0xff]
    %v286 = vld [vmem:[#allocation5 + $0x610] sm:$0xff]
    %v287 = vld [vmem:[#allocation5 + $0x618] sm:$0xff]
    %v288 = vld [vmem:[#allocation5 + $0x620] sm:$0xff]
    %v289 = vld [vmem:[#allocation5 + $0x628] sm:$0xff]
    %v290 = vld [vmem:[#allocation5 + $0x630] sm:$0xff]
    %v291 = vld [vmem:[#allocation5 + $0x638] sm:$0xff]
    %v292 = vld [vmem:[#allocation5 + $0x640] sm:$0xff]
    %v293 = vld [vmem:[#allocation5 + $0x648] sm:$0xff]
    %v294 = vld [vmem:[#allocation5 + $0x650] sm:$0xff]
    %v295 = vld [vmem:[#allocation5 + $0x658] sm:$0xff]
    %v296 = vld [vmem:[#allocation5 + $0x660] sm:$0xff]
    %v297 = vld [vmem:[#allocation5 + $0x668] sm:$0xff]
    %v298 = vld [vmem:[#allocation5 + $0x670] sm:$0xff]
    %v299 = vld [vmem:[#allocation5 + $0x678] sm:$0xff]
    %v300 = vld [vmem:[#allocation5 + $0x680] sm:$0xff]
    %v301 = vld [vmem:[#allocation5 + $0x688] sm:$0xff]
    %v302 = vld [vmem:[#allocation5 + $0x690] sm:$0xff]
    %v303 = vld [vmem:[#allocation5 + $0x698] sm:$0xff]
    %v304 = vld [vmem:[#allocation5 + $0x6a0] sm:$0xff]
    %v305 = vld [vmem:[#allocation5 + $0x6a8] sm:$0xff]
    %v306 = vld [vmem:[#allocation5 + $0x6b0] sm:$0xff]
    %v307 = vld [vmem:[#allocation5 + $0x6b8] sm:$0xff]
    %v308 = vld [vmem:[#allocation5 + $0x6c0] sm:$0xff]
    %v309 = vld [vmem:[#allocation5 + $0x6c8] sm:$0xff]
    %v310 = vld [vmem:[#allocation5 + $0x6d0] sm:$0xff]
    %v311 = vld [vmem:[#allocation5 + $0x6d8] sm:$0xff]
    %v312 = vld [vmem:[#allocation5 + $0x6e0] sm:$0xff]
    %v313 = vld [vmem:[#allocation5 + $0x6e8] sm:$0xff]
    %v314 = vld [vmem:[#allocation5 + $0x6f0] sm:$0xff]
    %v315 = vld [vmem:[#allocation5 + $0x6f8] sm:$0xff]
    %v316 = vld [vmem:[#allocation5 + $0x700] sm:$0xff]
    %v317 = vld [vmem:[#allocation5 + $0x708] sm:$0xff]
    %v318 = vld [vmem:[#allocation5 + $0x710] sm:$0xff]
    %v319 = vld [vmem:[#allocation5 + $0x718] sm:$0xff]
    %v320 = vld [vmem:[#allocation5 + $0x720] sm:$0xff]
    %v321 = vld [vmem:[#allocation5 + $0x728] sm:$0xff]
    %v322 = vld [vmem:[#allocation5 + $0x730] sm:$0xff]
    %v323 = vld [vmem:[#allocation5 + $0x738] sm:$0xff]
    %v324 = vld [vmem:[#allocation5 + $0x740] sm:$0xff]
    %v325 = vld [vmem:[#allocation5 + $0x748] sm:$0xff]
    %v326 = vld [vmem:[#allocation5 + $0x750] sm:$0xff]
    %v327 = vld [vmem:[#allocation5 + $0x758] sm:$0xff]
    %v328 = vld [vmem:[#allocation5 + $0x760] sm:$0xff]
    %v329 = vld [vmem:[#allocation5 + $0x768] sm:$0xff]
    %v330 = vld [vmem:[#allocation5 + $0x770] sm:$0xff]
    %v331 = vld [vmem:[#allocation5 + $0x778] sm:$0xff]
    %v332 = vld [vmem:[#allocation5 + $0x780] sm:$0xff]
    %v333 = vld [vmem:[#allocation5 + $0x788] sm:$0xff]
    %v334 = vld [vmem:[#allocation5 + $0x790] sm:$0xff]
    %v335 = vld [vmem:[#allocation5 + $0x798] sm:$0xff]
    %v336 = vld [vmem:[#allocation5 + $0x7a0] sm:$0xff]
    %v337 = vld [vmem:[#allocation5 + $0x7a8] sm:$0xff]
    %v338 = vld [vmem:[#allocation5 + $0x7b0] sm:$0xff]
    %v339 = vld [vmem:[#allocation5 + $0x7b8] sm:$0xff]
    %v340 = vld [vmem:[#allocation5 + $0x7c0] sm:$0xff]
    %v341 = vld [vmem:[#allocation5 + $0x7c8] sm:$0xff]
    %v342 = vld [vmem:[#allocation5 + $0x7d0] sm:$0xff]
    %v343 = vld [vmem:[#allocation5 + $0x7d8] sm:$0xff]
    %v344 = vld [vmem:[#allocation5 + $0x7e0] sm:$0xff]
    %v345 = vld [vmem:[#allocation5 + $0x7e8] sm:$0xff]
    %v346 = vld [vmem:[#allocation5 + $0x7f0] sm:$0xff]
    %v347 = vld [vmem:[#allocation5 + $0x7f8] sm:$0xff]
    %v348 = vld [vmem:[#allocation5 + $0x800] sm:$0xff]
    %v349 = vld [vmem:[#allocation5 + $0x808] sm:$0xff]
    %v350 = vld [vmem:[#allocation5 + $0x810] sm:$0xff]
    %v351 = vld [vmem:[#allocation5 + $0x818] sm:$0xff]
    %v352 = vld [vmem:[#allocation5 + $0x820] sm:$0xff]
    %v353 = vld [vmem:[#allocation5 + $0x828] sm:$0xff]
    %v354 = vld [vmem:[#allocation5 + $0x830] sm:$0xff]
    %v355 = vld [vmem:[#allocation5 + $0x838] sm:$0xff]
    %v356 = vld [vmem:[#allocation5 + $0x840] sm:$0xff]
    %v357 = vld [vmem:[#allocation5 + $0x848] sm:$0xff]
    %v358 = vld [vmem:[#allocation5 + $0x850] sm:$0xff]
    %v359 = vld [vmem:[#allocation5 + $0x858] sm:$0xff]
    %v360 = vld [vmem:[#allocation5 + $0x860] sm:$0xff]
    %v361 = vld [vmem:[#allocation5 + $0x868] sm:$0xff]
    %v362 = vld [vmem:[#allocation5 + $0x870] sm:$0xff]
    %v363 = vld [vmem:[#allocation5 + $0x878] sm:$0xff]
    %v364 = vld [vmem:[#allocation5 + $0x880] sm:$0xff]
    %v365 = vld [vmem:[#allocation5 + $0x888] sm:$0xff]
    %v366 = vld [vmem:[#allocation5 + $0x890] sm:$0xff]
    %v367 = vld [vmem:[#allocation5 + $0x898] sm:$0xff]
    %v368 = vld [vmem:[#allocation5 + $0x8a0] sm:$0xff]
    %v369 = vld [vmem:[#allocation5 + $0x8a8] sm:$0xff]
    %v370 = vld [vmem:[#allocation5 + $0x8b0] sm:$0xff]
    %v371 = vld [vmem:[#allocation5 + $0x8b8] sm:$0xff]
    %v372 = vld [vmem:[#allocation5 + $0x8c0] sm:$0xff]
    %v373 = vld [vmem:[#allocation5 + $0x8c8] sm:$0xff]
    %v374 = vld [vmem:[#allocation5 + $0x8d0] sm:$0xff]
    %v375 = vld [vmem:[#allocation5 + $0x8d8] sm:$0xff]
    %v376 = vld [vmem:[#allocation5 + $0x8e0] sm:$0xff]
    %v377 = vld [vmem:[#allocation5 + $0x8e8] sm:$0xff]
    %v378 = vld [vmem:[#allocation5 + $0x8f0] sm:$0x7]
    %v379 = vld [vmem:[#allocation5 + $0x8f8] sm:$0x7]
    %v380 = vld [vmem:[#allocation7] sm:$0x3]
    %v382 = vlaneseq
    %v383 = vshrl.u32 %v382, 7
    %v384 = vsub.s32 0, %v383
    %v385 = vrot.slane %v380, %v384
    %v386 = vlaneseq
    %v387 = vshrl.u32 %v386, 7
    %v388 = vsub.s32 1, %v387
    %v389 = vrot.slane %v380, %v388
    %vm392 = vcmask 1006592
    %v394 = vsel %vm392, %v91, 0
    %vm396 = vcmask 1042432
    %v398 = vsel %vm396, %v378, 0
    %v401 = vsel %vm396, %v379, 0
    %403 = vmatprep.subr.mxu0 %v123
    %404 = vmatpush1.msra.mxu0 %v122
    %405 = vmatprep.subr.mxu0 %v121
    %406 = vmatpush1.msra.mxu0 %v120
    %407 = vmatprep.subr.mxu0 %v119
    %408 = vmatpush1.msra.mxu0 %v118
    %409 = vmatprep.subr.mxu0 %v117
    %410 = vmatpush1.msra.mxu0 %v116
    %411 = vmatprep.subr.mxu0 %v115
    %412 = vmatpush1.msra.mxu0 %v114
    %413 = vmatprep.subr.mxu0 %v113
    %414 = vmatpush1.msra.mxu0 %v112
    %415 = vmatprep.subr.mxu0 %v111
    %416 = vmatpush1.msra.mxu0 %v110
    %417 = vmatprep.subr.mxu0 %v109
    %418 = vmatpush1.msra.mxu0 %v108
    %419 = vmatprep.subr.mxu0 %v107
    %420 = vmatpush1.msra.mxu0 %v106
    %421 = vmatprep.subr.mxu0 %v105
    %422 = vmatpush1.msra.mxu0 %v104
    %423 = vmatprep.subr.mxu0 %v103
    %424 = vmatpush1.msra.mxu0 %v102
    %425 = vmatprep.subr.mxu0 %v101
    %426 = vmatpush1.msra.mxu0 %v100
    %427 = vmatprep.subr.mxu0 %v99
    %428 = vmatpush1.msra.mxu0 %v98
    %429 = vmatprep.subr.mxu0 %v97
    %430 = vmatpush1.msra.mxu0 %v96
    %431 = vmatprep.subr.mxu0 %v95
    %432 = vmatpush1.msra.mxu0 %v94
    %433 = vmatprep.subr.mxu0 %v93
    %434 = vmatpush1.msra.mxu0 %v92
    %435 = vmatprep.subr.mxu0 %v155
    %436 = vmatpush2.msra.mxu0 %v154
    %437 = vmatprep.subr.mxu0 %v153
    %438 = vmatpush2.msra.mxu0 %v152
    %439 = vmatprep.subr.mxu0 %v151
    %440 = vmatpush2.msra.mxu0 %v150
    %441 = vmatprep.subr.mxu0 %v149
    %442 = vmatpush2.msra.mxu0 %v148
    %443 = vmatprep.subr.mxu0 %v147
    %444 = vmatpush2.msra.mxu0 %v146
    %445 = vmatprep.subr.mxu0 %v145
    %446 = vmatpush2.msra.mxu0 %v144
    %447 = vmatprep.subr.mxu0 %v143
    %448 = vmatpush2.msra.mxu0 %v142
    %449 = vmatprep.subr.mxu0 %v141
    %450 = vmatpush2.msra.mxu0 %v140
    %451 = vmatprep.subr.mxu0 %v139
    %452 = vmatpush2.msra.mxu0 %v138
    %453 = vmatprep.subr.mxu0 %v137
    %454 = vmatpush2.msra.mxu0 %v136
    %455 = vmatprep.subr.mxu0 %v135
    %456 = vmatpush2.msra.mxu0 %v134
    %457 = vmatprep.subr.mxu0 %v133
    %458 = vmatpush2.msra.mxu0 %v132
    %459 = vmatprep.subr.mxu0 %v131
    %460 = vmatpush2.msra.mxu0 %v130
    %461 = vmatprep.subr.mxu0 %v129
    %462 = vmatpush2.msra.mxu0 %v128
    %463 = vmatprep.subr.mxu0 %v127
    %464 = vmatpush2.msra.mxu0 %v126
    %465 = vmatprep.subr.mxu0 %v125
    %466 = vmatpush2.msra.mxu0 %v124
    %467 = vmatprep.mubr.f32.mxu0 %v84
    %468 = vmatmul.mubr.f32.gmra.mxu0 %v83
    %v469 = vpop.f32.mrf.mxu0
    %v470 = vadd.f32 %v385, %v469
    %v471 = vpop.f32.mrf.mxu0
    %v472 = vadd.f32 %v389, %v471
    %473 = vdwg.mxu0
    %474 = vmatprep.subr.mxu0 %v187
    %475 = vmatpush1.msra.mxu0 %v186
    %476 = vmatprep.subr.mxu0 %v185
    %477 = vmatpush1.msra.mxu0 %v184
    %478 = vmatprep.subr.mxu0 %v183
    %479 = vmatpush1.msra.mxu0 %v182
    %480 = vmatprep.subr.mxu0 %v181
    %481 = vmatpush1.msra.mxu0 %v180
    %482 = vmatprep.subr.mxu0 %v179
    %483 = vmatpush1.msra.mxu0 %v178
    %484 = vmatprep.subr.mxu0 %v177
    %485 = vmatpush1.msra.mxu0 %v176
    %486 = vmatprep.subr.mxu0 %v175
    %487 = vmatpush1.msra.mxu0 %v174
    %488 = vmatprep.subr.mxu0 %v173
    %489 = vmatpush1.msra.mxu0 %v172
    %490 = vmatprep.subr.mxu0 %v171
    %491 = vmatpush1.msra.mxu0 %v170
    %492 = vmatprep.subr.mxu0 %v169
    %493 = vmatpush1.msra.mxu0 %v168
    %494 = vmatprep.subr.mxu0 %v167
    %495 = vmatpush1.msra.mxu0 %v166
    %496 = vmatprep.subr.mxu0 %v165
    %497 = vmatpush1.msra.mxu0 %v164
    %498 = vmatprep.subr.mxu0 %v163
    %499 = vmatpush1.msra.mxu0 %v162
    %500 = vmatprep.subr.mxu0 %v161
    %501 = vmatpush1.msra.mxu0 %v160
    %502 = vmatprep.subr.mxu0 %v159
    %503 = vmatpush1.msra.mxu0 %v158
    %504 = vmatprep.subr.mxu0 %v157
    %505 = vmatpush1.msra.mxu0 %v156
    %506 = vmatprep.subr.mxu0 %v219
    %507 = vmatpush2.msra.mxu0 %v218
    %508 = vmatprep.subr.mxu0 %v217
    %509 = vmatpush2.msra.mxu0 %v216
    %510 = vmatprep.subr.mxu0 %v215
    %511 = vmatpush2.msra.mxu0 %v214
    %512 = vmatprep.subr.mxu0 %v213
    %513 = vmatpush2.msra.mxu0 %v212
    %514 = vmatprep.subr.mxu0 %v211
    %515 = vmatpush2.msra.mxu0 %v210
    %516 = vmatprep.subr.mxu0 %v209
    %517 = vmatpush2.msra.mxu0 %v208
    %518 = vmatprep.subr.mxu0 %v207
    %519 = vmatpush2.msra.mxu0 %v206
    %520 = vmatprep.subr.mxu0 %v205
    %521 = vmatpush2.msra.mxu0 %v204
    %522 = vmatprep.subr.mxu0 %v203
    %523 = vmatpush2.msra.mxu0 %v202
    %524 = vmatprep.subr.mxu0 %v201
    %525 = vmatpush2.msra.mxu0 %v200
    %526 = vmatprep.subr.mxu0 %v199
    %527 = vmatpush2.msra.mxu0 %v198
    %528 = vmatprep.subr.mxu0 %v197
    %529 = vmatpush2.msra.mxu0 %v196
    %530 = vmatprep.subr.mxu0 %v195
    %531 = vmatpush2.msra.mxu0 %v194
    %532 = vmatprep.subr.mxu0 %v193
    %533 = vmatpush2.msra.mxu0 %v192
    %534 = vmatprep.subr.mxu0 %v191
    %535 = vmatpush2.msra.mxu0 %v190
    %536 = vmatprep.subr.mxu0 %v189
    %537 = vmatpush2.msra.mxu0 %v188
    %538 = vmatprep.mubr.f32.mxu0 %v86
    %539 = vmatmul.mubr.f32.gmra.mxu0 %v85
    %v540 = vpop.f32.mrf.mxu0
    %v541 = vadd.f32 %v470, %v540
    %v542 = vpop.f32.mrf.mxu0
    %v543 = vadd.f32 %v472, %v542
    %544 = vdwg.mxu0
    %545 = vmatprep.subr.mxu0 %v251
    %546 = vmatpush1.msra.mxu0 %v250
    %547 = vmatprep.subr.mxu0 %v249
    %548 = vmatpush1.msra.mxu0 %v248
    %549 = vmatprep.subr.mxu0 %v247
    %550 = vmatpush1.msra.mxu0 %v246
    %551 = vmatprep.subr.mxu0 %v245
    %552 = vmatpush1.msra.mxu0 %v244
    %553 = vmatprep.subr.mxu0 %v243
    %554 = vmatpush1.msra.mxu0 %v242
    %555 = vmatprep.subr.mxu0 %v241
    %556 = vmatpush1.msra.mxu0 %v240
    %557 = vmatprep.subr.mxu0 %v239
    %558 = vmatpush1.msra.mxu0 %v238
    %559 = vmatprep.subr.mxu0 %v237
    %560 = vmatpush1.msra.mxu0 %v236
    %561 = vmatprep.subr.mxu0 %v235
    %562 = vmatpush1.msra.mxu0 %v234
    %563 = vmatprep.subr.mxu0 %v233
    %564 = vmatpush1.msra.mxu0 %v232
    %565 = vmatprep.subr.mxu0 %v231
    %566 = vmatpush1.msra.mxu0 %v230
    %567 = vmatprep.subr.mxu0 %v229
    %568 = vmatpush1.msra.mxu0 %v228
    %569 = vmatprep.subr.mxu0 %v227
    %570 = vmatpush1.msra.mxu0 %v226
    %571 = vmatprep.subr.mxu0 %v225
    %572 = vmatpush1.msra.mxu0 %v224
    %573 = vmatprep.subr.mxu0 %v223
    %574 = vmatpush1.msra.mxu0 %v222
    %575 = vmatprep.subr.mxu0 %v221
    %576 = vmatpush1.msra.mxu0 %v220
    %577 = vmatprep.subr.mxu0 %v283
    %578 = vmatpush2.msra.mxu0 %v282
    %579 = vmatprep.subr.mxu0 %v281
    %580 = vmatpush2.msra.mxu0 %v280
    %581 = vmatprep.subr.mxu0 %v279
    %582 = vmatpush2.msra.mxu0 %v278
    %583 = vmatprep.subr.mxu0 %v277
    %584 = vmatpush2.msra.mxu0 %v276
    %585 = vmatprep.subr.mxu0 %v275
    %586 = vmatpush2.msra.mxu0 %v274
    %587 = vmatprep.subr.mxu0 %v273
    %588 = vmatpush2.msra.mxu0 %v272
    %589 = vmatprep.subr.mxu0 %v271
    %590 = vmatpush2.msra.mxu0 %v270
    %591 = vmatprep.subr.mxu0 %v269
    %592 = vmatpush2.msra.mxu0 %v268
    %593 = vmatprep.subr.mxu0 %v267
    %594 = vmatpush2.msra.mxu0 %v266
    %595 = vmatprep.subr.mxu0 %v265
    %596 = vmatpush2.msra.mxu0 %v264
    %597 = vmatprep.subr.mxu0 %v263
    %598 = vmatpush2.msra.mxu0 %v262
    %599 = vmatprep.subr.mxu0 %v261
    %600 = vmatpush2.msra.mxu0 %v260
    %601 = vmatprep.subr.mxu0 %v259
    %602 = vmatpush2.msra.mxu0 %v258
    %603 = vmatprep.subr.mxu0 %v257
    %604 = vmatpush2.msra.mxu0 %v256
    %605 = vmatprep.subr.mxu0 %v255
    %606 = vmatpush2.msra.mxu0 %v254
    %607 = vmatprep.subr.mxu0 %v253
    %608 = vmatpush2.msra.mxu0 %v252
    %609 = vmatprep.mubr.f32.mxu0 %v88
    %610 = vmatmul.mubr.f32.gmra.mxu0 %v87
    %v611 = vpop.f32.mrf.mxu0
    %v612 = vadd.f32 %v541, %v611
    %v613 = vpop.f32.mrf.mxu0
    %v614 = vadd.f32 %v543, %v613
    %615 = vdwg.mxu0
    %616 = vmatprep.subr.mxu0 %v315
    %617 = vmatpush1.msra.mxu0 %v314
    %618 = vmatprep.subr.mxu0 %v313
    %619 = vmatpush1.msra.mxu0 %v312
    %620 = vmatprep.subr.mxu0 %v311
    %621 = vmatpush1.msra.mxu0 %v310
    %622 = vmatprep.subr.mxu0 %v309
    %623 = vmatpush1.msra.mxu0 %v308
    %624 = vmatprep.subr.mxu0 %v307
    %625 = vmatpush1.msra.mxu0 %v306
    %626 = vmatprep.subr.mxu0 %v305
    %627 = vmatpush1.msra.mxu0 %v304
    %628 = vmatprep.subr.mxu0 %v303
    %629 = vmatpush1.msra.mxu0 %v302
    %630 = vmatprep.subr.mxu0 %v301
    %631 = vmatpush1.msra.mxu0 %v300
    %632 = vmatprep.subr.mxu0 %v299
    %633 = vmatpush1.msra.mxu0 %v298
    %634 = vmatprep.subr.mxu0 %v297
    %635 = vmatpush1.msra.mxu0 %v296
    %636 = vmatprep.subr.mxu0 %v295
    %637 = vmatpush1.msra.mxu0 %v294
    %638 = vmatprep.subr.mxu0 %v293
    %639 = vmatpush1.msra.mxu0 %v292
    %640 = vmatprep.subr.mxu0 %v291
    %641 = vmatpush1.msra.mxu0 %v290
    %642 = vmatprep.subr.mxu0 %v289
    %643 = vmatpush1.msra.mxu0 %v288
    %644 = vmatprep.subr.mxu0 %v287
    %645 = vmatpush1.msra.mxu0 %v286
    %646 = vmatprep.subr.mxu0 %v285
    %647 = vmatpush1.msra.mxu0 %v284
    %648 = vmatprep.subr.mxu0 %v347
    %649 = vmatpush2.msra.mxu0 %v346
    %650 = vmatprep.subr.mxu0 %v345
    %651 = vmatpush2.msra.mxu0 %v344
    %652 = vmatprep.subr.mxu0 %v343
    %653 = vmatpush2.msra.mxu0 %v342
    %654 = vmatprep.subr.mxu0 %v341
    %655 = vmatpush2.msra.mxu0 %v340
    %656 = vmatprep.subr.mxu0 %v339
    %657 = vmatpush2.msra.mxu0 %v338
    %658 = vmatprep.subr.mxu0 %v337
    %659 = vmatpush2.msra.mxu0 %v336
    %660 = vmatprep.subr.mxu0 %v335
    %661 = vmatpush2.msra.mxu0 %v334
    %662 = vmatprep.subr.mxu0 %v333
    %663 = vmatpush2.msra.mxu0 %v332
    %664 = vmatprep.subr.mxu0 %v331
    %665 = vmatpush2.msra.mxu0 %v330
    %666 = vmatprep.subr.mxu0 %v329
    %667 = vmatpush2.msra.mxu0 %v328
    %668 = vmatprep.subr.mxu0 %v327
    %669 = vmatpush2.msra.mxu0 %v326
    %670 = vmatprep.subr.mxu0 %v325
    %671 = vmatpush2.msra.mxu0 %v324
    %672 = vmatprep.subr.mxu0 %v323
    %673 = vmatpush2.msra.mxu0 %v322
    %674 = vmatprep.subr.mxu0 %v321
    %675 = vmatpush2.msra.mxu0 %v320
    %676 = vmatprep.subr.mxu0 %v319
    %677 = vmatpush2.msra.mxu0 %v318
    %678 = vmatprep.subr.mxu0 %v317
    %679 = vmatpush2.msra.mxu0 %v316
    %680 = vmatprep.mubr.f32.mxu0 %v90
    %681 = vmatmul.mubr.f32.gmra.mxu0 %v89
    %v682 = vpop.f32.mrf.mxu0
    %v683 = vadd.f32 %v612, %v682
    %v684 = vpop.f32.mrf.mxu0
    %v685 = vadd.f32 %v614, %v684
    %686 = vdwg.mxu0
    %687 = vmatprep.subr.mxu0 %v401
    %688 = vmatpush1.msra.mxu0 %v398
    %689 = vmatprep.subr.mxu0 %v377
    %690 = vmatpush1.msra.mxu0 %v376
    %691 = vmatprep.subr.mxu0 %v375
    %692 = vmatpush1.msra.mxu0 %v374
    %693 = vmatprep.subr.mxu0 %v373
    %694 = vmatpush1.msra.mxu0 %v372
    %695 = vmatprep.subr.mxu0 %v371
    %696 = vmatpush1.msra.mxu0 %v370
    %697 = vmatprep.subr.mxu0 %v369
    %698 = vmatpush1.msra.mxu0 %v368
    %699 = vmatprep.subr.mxu0 %v367
    %700 = vmatpush1.msra.mxu0 %v366
    %701 = vmatprep.subr.mxu0 %v365
    %702 = vmatpush1.msra.mxu0 %v364
    %703 = vmatprep.subr.mxu0 %v363
    %704 = vmatpush1.msra.mxu0 %v362
    %705 = vmatprep.subr.mxu0 %v361
    %706 = vmatpush1.msra.mxu0 %v360
    %707 = vmatprep.subr.mxu0 %v359
    %708 = vmatpush1.msra.mxu0 %v358
    %709 = vmatprep.subr.mxu0 %v357
    %710 = vmatpush1.msra.mxu0 %v356
    %711 = vmatprep.subr.mxu0 %v355
    %712 = vmatpush1.msra.mxu0 %v354
    %713 = vmatprep.subr.mxu0 %v353
    %714 = vmatpush1.msra.mxu0 %v352
    %715 = vmatprep.subr.mxu0 %v351
    %716 = vmatpush1.msra.mxu0 %v350
    %717 = vmatprep.subr.mxu0 %v349
    %718 = vmatpush1.msra.mxu0 %v348
    %719 = vmatprep.subr.mxu0 0.0
    %720 = vmatpush2.msra.mxu0 0.0
    %721 = vmatprep.subr.mxu0 0.0
    %722 = vmatpush2.msra.mxu0 0.0
    %723 = vmatprep.subr.mxu0 0.0
    %724 = vmatpush2.msra.mxu0 0.0
    %725 = vmatprep.subr.mxu0 0.0
    %726 = vmatpush2.msra.mxu0 0.0
    %727 = vmatprep.subr.mxu0 0.0
    %728 = vmatpush2.msra.mxu0 0.0
    %729 = vmatprep.subr.mxu0 0.0
    %730 = vmatpush2.msra.mxu0 0.0
    %731 = vmatprep.subr.mxu0 0.0
    %732 = vmatpush2.msra.mxu0 0.0
    %733 = vmatprep.subr.mxu0 0.0
    %734 = vmatpush2.msra.mxu0 0.0
    %735 = vmatprep.subr.mxu0 0.0
    %736 = vmatpush2.msra.mxu0 0.0
    %737 = vmatprep.subr.mxu0 0.0
    %738 = vmatpush2.msra.mxu0 0.0
    %739 = vmatprep.subr.mxu0 0.0
    %740 = vmatpush2.msra.mxu0 0.0
    %741 = vmatprep.subr.mxu0 0.0
    %742 = vmatpush2.msra.mxu0 0.0
    %743 = vmatprep.subr.mxu0 0.0
    %744 = vmatpush2.msra.mxu0 0.0
    %745 = vmatprep.subr.mxu0 0.0
    %746 = vmatpush2.msra.mxu0 0.0
    %747 = vmatprep.subr.mxu0 0.0
    %748 = vmatpush2.msra.mxu0 0.0
    %749 = vmatprep.subr.mxu0 0.0
    %750 = vmatpush2.msra.mxu0 0.0
    %751 = vmatprep.mubr.f32.mxu0 0.0
    %752 = vmatmul.mubr.f32.gmra.mxu0 %v394
    %v753 = vpop.f32.mrf.mxu0
    %v754 = vadd.f32 %v683, %v753
    %v755 = vpop.f32.mrf.mxu0
    %v756 = vadd.f32 %v685, %v755
    %757 = vdwg.mxu0
    %v758 = vmax.f32 %v754, 0.0
    %v759 = vmax.f32 %v756, 0.0
    %v760 = vld [vmem:[#allocation8] sm:$0xff]
    %v761 = vld [vmem:[#allocation8 + $0x8] sm:$0xff]
    %v762 = vld [vmem:[#allocation8 + $0x10] sm:$0xff]
    %v763 = vld [vmem:[#allocation8 + $0x18] sm:$0xff]
    %v764 = vld [vmem:[#allocation8 + $0x20] sm:$0xff]
    %v765 = vld [vmem:[#allocation8 + $0x28] sm:$0xff]
    %v766 = vld [vmem:[#allocation8 + $0x30] sm:$0xff]
    %v767 = vld [vmem:[#allocation8 + $0x38] sm:$0xff]
    %v768 = vld [vmem:[#allocation8 + $0x40] sm:$0xff]
    %v769 = vld [vmem:[#allocation8 + $0x48] sm:$0xff]
    %v770 = vld [vmem:[#allocation8 + $0x50] sm:$0xff]
    %v771 = vld [vmem:[#allocation8 + $0x58] sm:$0xff]
    %v772 = vld [vmem:[#allocation8 + $0x60] sm:$0xff]
    %v773 = vld [vmem:[#allocation8 + $0x68] sm:$0xff]
    %v774 = vld [vmem:[#allocation8 + $0x70] sm:$0xff]
    %v775 = vld [vmem:[#allocation8 + $0x78] sm:$0xff]
    %v776 = vld [vmem:[#allocation8 + $0x80] sm:$0xff]
    %v777 = vld [vmem:[#allocation8 + $0x88] sm:$0xff]
    %v778 = vld [vmem:[#allocation8 + $0x90] sm:$0xff]
    %v779 = vld [vmem:[#allocation8 + $0x98] sm:$0xff]
    %v780 = vld [vmem:[#allocation8 + $0xa0] sm:$0xff]
    %v781 = vld [vmem:[#allocation8 + $0xa8] sm:$0xff]
    %v782 = vld [vmem:[#allocation8 + $0xb0] sm:$0xff]
    %v783 = vld [vmem:[#allocation8 + $0xb8] sm:$0xff]
    %v784 = vld [vmem:[#allocation8 + $0xc0] sm:$0xff]
    %v785 = vld [vmem:[#allocation8 + $0xc8] sm:$0xff]
    %v786 = vld [vmem:[#allocation8 + $0xd0] sm:$0xff]
    %v787 = vld [vmem:[#allocation8 + $0xd8] sm:$0xff]
    %v788 = vld [vmem:[#allocation8 + $0xe0] sm:$0xff]
    %v789 = vld [vmem:[#allocation8 + $0xe8] sm:$0xff]
    %v790 = vld [vmem:[#allocation8 + $0xf0] sm:$0xff]
    %v791 = vld [vmem:[#allocation8 + $0xf8] sm:$0xff]
    %v792 = vld [vmem:[#allocation10] sm:$0x1]
    %v794 = vlaneseq
    %v795 = vshrl.u32 %v794, 7
    %v796 = vsub.s32 0, %v795
    %v797 = vrot.slane %v792, %v796
    %799 = vmatprep.subr.mxu0 0.0
    %800 = vmatpush1.msra.mxu0 %v775
    %801 = vmatprep.subr.mxu0 0.0
    %802 = vmatpush1.msra.mxu0 %v774
    %803 = vmatprep.subr.mxu0 0.0
    %804 = vmatpush1.msra.mxu0 %v773
    %805 = vmatprep.subr.mxu0 0.0
    %806 = vmatpush1.msra.mxu0 %v772
    %807 = vmatprep.subr.mxu0 0.0
    %808 = vmatpush1.msra.mxu0 %v771
    %809 = vmatprep.subr.mxu0 0.0
    %810 = vmatpush1.msra.mxu0 %v770
    %811 = vmatprep.subr.mxu0 0.0
    %812 = vmatpush1.msra.mxu0 %v769
    %813 = vmatprep.subr.mxu0 0.0
    %814 = vmatpush1.msra.mxu0 %v768
    %815 = vmatprep.subr.mxu0 0.0
    %816 = vmatpush1.msra.mxu0 %v767
    %817 = vmatprep.subr.mxu0 0.0
    %818 = vmatpush1.msra.mxu0 %v766
    %819 = vmatprep.subr.mxu0 0.0
    %820 = vmatpush1.msra.mxu0 %v765
    %821 = vmatprep.subr.mxu0 0.0
    %822 = vmatpush1.msra.mxu0 %v764
    %823 = vmatprep.subr.mxu0 0.0
    %824 = vmatpush1.msra.mxu0 %v763
    %825 = vmatprep.subr.mxu0 0.0
    %826 = vmatpush1.msra.mxu0 %v762
    %827 = vmatprep.subr.mxu0 0.0
    %828 = vmatpush1.msra.mxu0 %v761
    %829 = vmatprep.subr.mxu0 0.0
    %830 = vmatpush1.msra.mxu0 %v760
    %831 = vmatprep.subr.mxu0 0.0
    %832 = vmatpush2.msra.mxu0 %v791
    %833 = vmatprep.subr.mxu0 0.0
    %834 = vmatpush2.msra.mxu0 %v790
    %835 = vmatprep.subr.mxu0 0.0
    %836 = vmatpush2.msra.mxu0 %v789
    %837 = vmatprep.subr.mxu0 0.0
    %838 = vmatpush2.msra.mxu0 %v788
    %839 = vmatprep.subr.mxu0 0.0
    %840 = vmatpush2.msra.mxu0 %v787
    %841 = vmatprep.subr.mxu0 0.0
    %842 = vmatpush2.msra.mxu0 %v786
    %843 = vmatprep.subr.mxu0 0.0
    %844 = vmatpush2.msra.mxu0 %v785
    %845 = vmatprep.subr.mxu0 0.0
    %846 = vmatpush2.msra.mxu0 %v784
    %847 = vmatprep.subr.mxu0 0.0
    %848 = vmatpush2.msra.mxu0 %v783
    %849 = vmatprep.subr.mxu0 0.0
    %850 = vmatpush2.msra.mxu0 %v782
    %851 = vmatprep.subr.mxu0 0.0
    %852 = vmatpush2.msra.mxu0 %v781
    %853 = vmatprep.subr.mxu0 0.0
    %854 = vmatpush2.msra.mxu0 %v780
    %855 = vmatprep.subr.mxu0 0.0
    %856 = vmatpush2.msra.mxu0 %v779
    %857 = vmatprep.subr.mxu0 0.0
    %858 = vmatpush2.msra.mxu0 %v778
    %859 = vmatprep.subr.mxu0 0.0
    %860 = vmatpush2.msra.mxu0 %v777
    %861 = vmatprep.subr.mxu0 0.0
    %862 = vmatpush2.msra.mxu0 %v776
    %863 = vmatprep.mubr.f32.mxu0 %v759
    %864 = vmatmul.mubr.f32.gmra.mxu0 %v758
    %v865 = vpop.f32.mrf.mxu0
    %v866 = vadd.f32 %v797, %v865
    %v867 = vpop.f32.mrf.mxu0
    %868 = vdwg.mxu0
    %869 = vst [vmem:[#allocation11] sm:$0xff] %v866
    // Predicated region
    $region42: #{test_net_forward.1} parent=1 // pred_check
      _
    $region43: #{test_net_forward.1} parent=1 // pred_check_branch
      %871 = sbr.rel (0) target = $region45
    $region44: #{test_net_forward.1} parent=1 // pred_region
      %s873 = ssub.s32 128, 128
      %874 = vsyncadd [#allocation4], %s873
      %s876 = sshll.u32 [#allocation11], 4
      %s877 = int_to_ptr.vmem [resolvable:$true] %s876
      %879 = dma.vmem_to_hbm [thread:$0]  %s877, 128, %s5, [#allocation4]
    $region45: #{test_net_forward.1} parent=1 // pred_fallthru
      _
    // Predicated region
    $region46: #{test_net_forward.1} parent=1 // pred_check
      _
    $region47: #{test_net_forward.1} parent=1 // pred_check_branch
      %881 = sbr.rel (0) target = $region49
    $region48: #{test_net_forward.1} parent=1 // pred_region
      %882 = dma.done [#allocation4], 128
    $region49: #{test_net_forward.1} parent=1 // pred_fallthru
      _
    %883 = vsyncpa [#allocation3], 1
    %884 = vsyncpa [#allocation6], 1
    %885 = vsyncpa [#allocation9], 1
    %886 = vsyncpa [#allocation4], 1

</llo_original>
